<compile_context>
chip_gen: v7x
topology: tpu7x:2x2x1
jax: 0.10.0
libtpu: 0.0.40
codegen_flags: <defaults>
</compile_context>

<pallas_src>
import functools

import jax
import jax.numpy as jnp
from jax.experimental import pallas as pl
from jax.experimental.pallas import tpu as pltpu


# --------------------------------------------------------------------------- #
# shared in-kernel helpers
# --------------------------------------------------------------------------- #
def _incidence_norms(h_bf, w_f32):
    """Per-graph normalized incidence  D^{-1} H diag(w) B^{-1}  (bf16 for MXU)."""
    f32 = jnp.float32
    h = h_bf.astype(f32)                                         # 0/1 -> exact
    edge_deg = jnp.sum(h, axis=0, keepdims=True)                 # (1, E)  B_e
    inv_b = jnp.where(edge_deg > 0.0,
                      pl.reciprocal(edge_deg, approx=True), 0.0)
    node_deg = jnp.sum(h * w_f32, axis=1, keepdims=True)         # (R, 1)  D_i
    inv_d = jnp.where(node_deg > 0.0,
                      pl.reciprocal(node_deg, approx=True), 0.0)
    # Fold both normalizers into the node-side incidence once: removes the
    # per-conv (R, hidden) broadcast multiplies.
    return (inv_d * h * (w_f32 * inv_b)).astype(jnp.bfloat16)    # (R, E)


def _hyperconv(feat_bf, wmat_bf, bias_f32, h_bf, h_norm_bf):
    """X' = D^{-1} H diag(w) B^{-1} H^T (X Theta + b) for one graph block."""
    f32, bf16 = jnp.float32, jnp.bfloat16
    xt = jnp.dot(feat_bf, wmat_bf, preferred_element_type=f32) + bias_f32  # (R, H)
    # H^T @ (X Theta) without materializing a transposed incidence copy:
    m = jax.lax.dot_general(h_bf, xt.astype(bf16),
                            dimension_numbers=(((0,), (0,)), ((), ())),
                            preferred_element_type=f32)                    # (E, H)
    return jnp.dot(h_norm_bf, m.astype(bf16), preferred_element_type=f32)  # (R, H)


# --------------------------------------------------------------------------- #
# pass 1: per-graph HypergraphConv1 + BatchNorm partial statistics
# --------------------------------------------------------------------------- #
def _conv1_kernel(x_ref, h_ref, ew_ref, w1_ref, b1_ref,
                  x1_ref, psum_ref, psumsq_ref):
    h_bf = h_ref[...]                                   # (R, E)  bf16, 0/1
    w = ew_ref[...].astype(jnp.float32)                 # (1, E)
    h_norm = _incidence_norms(h_bf, w)
    x1 = _hyperconv(x_ref[...], w1_ref[...], b1_ref[...], h_bf, h_norm)  # (R, H) f32
    x1_ref[...] = x1
    # per-graph partial statistics for the global (all-node) BatchNorm1d
    psum_ref[...] = jnp.sum(x1, axis=0, keepdims=True)              # (1, H)
    psumsq_ref[...] = jnp.sum(x1 * x1, axis=0, keepdims=True)       # (1, H)


# --------------------------------------------------------------------------- #
# pass 2: global BatchNorm + SiLU + HypergraphConv2 + pool + final Linear
# --------------------------------------------------------------------------- #
def _bn_conv2_head_kernel(x1_ref, h_ref, ew_ref, psum_ref, psumsq_ref,
                          gamma_ref, beta_ref, w2_ref, b2_ref, wf_ref, bf_ref,
                          out_ref, *, inv_total_nodes, half_hidden):
    f32, bf16 = jnp.float32, jnp.bfloat16

    # BatchNorm1d training-mode statistics over ALL nodes of ALL graphs,
    # reconstructed in f32 from the per-graph partial sums (linear in B).
    mean = jnp.sum(psum_ref[...], axis=0) * inv_total_nodes        # (1, H)
    ex2 = jnp.sum(psumsq_ref[...], axis=0) * inv_total_nodes       # (1, H)
    var = jnp.maximum(ex2 - mean * mean, 0.0)                      # biased var

    x1 = x1_ref[...]                                               # (R, H) f32
    xbn = (x1 - mean) * jax.lax.rsqrt(var + 1e-5)
    xbn = xbn * gamma_ref[...] + beta_ref[...]
    xact = xbn * jax.nn.sigmoid(xbn)                               # SiLU (f32)

    h_bf = h_ref[...]
    w = ew_ref[...].astype(f32)
    h_norm = _incidence_norms(h_bf, w)
    x2 = _hyperconv(xact.astype(bf16), w2_ref[...], b2_ref[...],
                    h_bf, h_norm)                                  # (R, H2) f32

    # global mean / max pool over this graph's nodes: 2-D sublane reductions
    mean_pool = jnp.mean(x2, axis=0, keepdims=True)                # (1, H2)
    max_pool = jnp.max(x2, axis=0, keepdims=True)                  # (1, H2)

    # embeddingFinal: Linear(2*H2, 1), applied without a lane concat
    wf = wf_ref[...]                                               # (2*H2, 1) f32
    logit = (jnp.dot(mean_pool, wf[:half_hidden, :], preferred_element_type=f32)
             + jnp.dot(max_pool, wf[half_hidden:, :], preferred_element_type=f32)
             + bf_ref[...])                                        # (1, 1)
    out_ref[...] = logit


# --------------------------------------------------------------------------- #
# wrapper
# --------------------------------------------------------------------------- #
def _nbytes(shape, dtype):
    n = 1
    for d in shape:
        n *= int(d)
    return n * jnp.dtype(dtype).itemsize


def _compiler_params(per_step_bytes):
    # Size the scoped-VMEM limit from the double-buffered tile footprint instead
    # of relying on the conservative default; clamp well under the smallest
    # physical VMEM (v7x: 64 MiB).  "parallel" shards the per-graph grid across
    # v7x's two TensorCores (no-op on v5e/v6e).
    limit = int(min(56 * 2**20, max(8 * 2**20, 4 * per_step_bytes + (2 << 20))))
    return pltpu.CompilerParams(
        dimension_semantics=("parallel",),
        vmem_limit_bytes=limit,
    )


def fc_hypergraph_forward(x, incidence, edge_weight, params, *,
                          num_graphs, nodes_per_graph):
    f32, bf16 = jnp.float32, jnp.bfloat16
    B, R = num_graphs, nodes_per_graph
    N, F = x.shape
    E = incidence.shape[-1]
    H = params["w1"].shape[1]
    H2 = params["w2"].shape[1]

    # bf16 for MXU operands (halves HBM->VMEM bytes); incidence is 0/1 -> exact.
    x_bf = x.astype(bf16)
    h_bf = incidence.reshape(B, R, E).astype(bf16)
    ew = edge_weight.reshape(B, 1, E).astype(f32)

    w1 = params["w1"].astype(bf16)
    b1 = params["b1"].reshape(1, H).astype(f32)
    gamma = params["gamma"].reshape(1, H).astype(f32)
    beta = params["beta"].reshape(1, H).astype(f32)
    w2 = params["w2"].astype(bf16)
    b2 = params["b2"].reshape(1, H2).astype(f32)
    wf = params["wf"].astype(f32)
    bf = params["bf"].reshape(1, 1).astype(f32)

    # ------------- pass 1: per-graph conv1 + BN partial statistics -----------
    step1_bytes = sum([
        _nbytes((R, F), bf16), _nbytes((R, E), bf16), _nbytes((1, E), f32),
        _nbytes((F, H), bf16), _nbytes((1, H), f32),
        _nbytes((R, H), f32), 2 * _nbytes((1, H), f32),
    ])
    x1, psum, psumsq = pl.pallas_call(
        _conv1_kernel,
        grid=(B,),
        in_specs=[
            pl.BlockSpec((R, F), lambda b: (b, 0)),            # x (per-graph rows)
            pl.BlockSpec((None, R, E), lambda b: (b, 0, 0)),   # incidence block
            pl.BlockSpec((None, 1, E), lambda b: (b, 0, 0)),   # hyperedge weights
            pl.BlockSpec((F, H), lambda b: (0, 0)),            # Theta1 (resident)
            pl.BlockSpec((1, H), lambda b: (0, 0)),            # bias1
        ],
        out_specs=[
            pl.BlockSpec((R, H), lambda b: (b, 0)),            # x1
            pl.BlockSpec((None, 1, H), lambda b: (b, 0, 0)),   # sum(x1)  per graph
            pl.BlockSpec((None, 1, H), lambda b: (b, 0, 0)),   # sum(x1^2) per graph
        ],
        out_shape=(
            jax.ShapeDtypeStruct((N, H), f32),
            jax.ShapeDtypeStruct((B, 1, H), f32),
            jax.ShapeDtypeStruct((B, 1, H), f32),
        ),
        compiler_params=_compiler_params(step1_bytes),
    )(x_bf, h_bf, ew, w1, b1)

    # --------- pass 2: BN + SiLU + conv2 + pooling + final linear ------------
    kernel2 = functools.partial(
        _bn_conv2_head_kernel,
        inv_total_nodes=1.0 / float(N),
        half_hidden=H2,
    )
    step2_bytes = sum([
        _nbytes((R, H), f32), _nbytes((R, E), bf16), _nbytes((1, E), f32),
        2 * _nbytes((B, 1, H), f32), 2 * _nbytes((1, H), f32),
        _nbytes((H, H2), bf16), _nbytes((1, H2), f32),
        _nbytes((2 * H2, 1), f32), 2 * _nbytes((1, 1), f32),
    ])
    logits = pl.pallas_call(
        kernel2,
        grid=(B,),
        in_specs=[
            pl.BlockSpec((R, H), lambda b: (b, 0)),            # x1
            pl.BlockSpec((None, R, E), lambda b: (b, 0, 0)),   # incidence block
            pl.BlockSpec((None, 1, E), lambda b: (b, 0, 0)),   # hyperedge weights
            pl.BlockSpec((B, 1, H), lambda b: (0, 0, 0)),      # partial sums (all graphs)
            pl.BlockSpec((B, 1, H), lambda b: (0, 0, 0)),      # partial sum-sqs (all graphs)
            pl.BlockSpec((1, H), lambda b: (0, 0)),            # gamma
            pl.BlockSpec((1, H), lambda b: (0, 0)),            # beta
            pl.BlockSpec((H, H2), lambda b: (0, 0)),           # Theta2
            pl.BlockSpec((1, H2), lambda b: (0, 0)),           # bias2
            pl.BlockSpec((2 * H2, 1), lambda b: (0, 0)),       # final linear W
            pl.BlockSpec((1, 1), lambda b: (0, 0)),            # final linear b
        ],
        out_specs=pl.BlockSpec((None, 1, 1), lambda b: (b, 0, 0)),
        out_shape=jax.ShapeDtypeStruct((B, 1, 1), f32),
        compiler_params=_compiler_params(step2_bytes),
    )(x1, h_bf, ew, psum, psumsq, gamma, beta, w2, b2, wf, bf)

    return logits.reshape(B, 1)


# --------------------------------------------------------------------------- #
# references (for the correctness check)
# --------------------------------------------------------------------------- #
def _reference_f32(x, incidence, edge_weight, params):
    """Pure f32 JAX reference mirroring the PyTorch forward."""
    f32 = jnp.float32
    B, R, E = incidence.shape
    h = incidence.astype(f32)
    w = edge_weight.reshape(B, 1, E).astype(f32)
    edge_deg = jnp.sum(h, axis=1, keepdims=True)
    inv_b = jnp.where(edge_deg > 0, 1.0 / edge_deg, 0.0)
    node_deg = jnp.sum(h * w, axis=2, keepdims=True)
    inv_d = jnp.where(node_deg > 0, 1.0 / node_deg, 0.0)
    h_norm = inv_d * h * (w * inv_b)
    xg = x.reshape(B, R, -1)

    def conv(feat, wm, b):
        xt = feat @ wm + b
        m = jnp.einsum("bre,brh->beh", h, xt)
        return jnp.einsum("bre,beh->brh", h_norm, m)

    x1 = conv(xg, params["w1"], params["b1"]).reshape(B * R, -1)
    mean = jnp.mean(x1, axis=0, keepdims=True)
    var = jnp.mean((x1 - mean) ** 2, axis=0, keepdims=True)
    xbn = (x1 - mean) / jnp.sqrt(var + 1e-5) * params["gamma"] + params["beta"]
    xact = xbn * jax.nn.sigmoid(xbn)
    x2 = conv(xact.reshape(B, R, -1), params["w2"], params["b2"])
    feat = jnp.concatenate([jnp.mean(x2, axis=1), jnp.max(x2, axis=1)], axis=1)
    return feat @ params["wf"] + params["bf"]


def _reference_bf16(x, incidence, edge_weight, params):
    """Dtype-matched reference (same bf16 matmul casts as the kernel)."""
    f32, bf16 = jnp.float32, jnp.bfloat16
    B, R, E = incidence.shape
    h = incidence.astype(f32)
    w = edge_weight.reshape(B, 1, E).astype(f32)
    edge_deg = jnp.sum(h, axis=1, keepdims=True)
    inv_b = jnp.where(edge_deg > 0, 1.0 / edge_deg, 0.0)
    node_deg = jnp.sum(h * w, axis=2, keepdims=True)
    inv_d = jnp.where(node_deg > 0, 1.0 / node_deg, 0.0)
    h_bf = incidence.astype(bf16)
    h_norm = (inv_d * h * (w * inv_b)).astype(bf16)
    xg = x.astype(bf16).reshape(B, R, -1)
    w1, w2 = params["w1"].astype(bf16), params["w2"].astype(bf16)

    def conv(feat_bf, wm_bf, b):
        xt = jnp.einsum("brf,fh->brh", feat_bf, wm_bf,
                        preferred_element_type=f32) + b
        m = jnp.einsum("bre,brh->beh", h_bf, xt.astype(bf16),
                       preferred_element_type=f32)
        return jnp.einsum("bre,beh->brh", h_norm, m.astype(bf16),
                          preferred_element_type=f32)

    x1 = conv(xg, w1, params["b1"]).reshape(B * R, -1)
    n = x1.shape[0]
    mean = jnp.sum(x1, axis=0, keepdims=True) / n
    var = jnp.maximum(jnp.sum(x1 * x1, axis=0, keepdims=True) / n - mean * mean, 0.0)
    xbn = (x1 - mean) * jax.lax.rsqrt(var + 1e-5) * params["gamma"] + params["beta"]
    xact = xbn * jax.nn.sigmoid(xbn)
    x2 = conv(xact.astype(bf16).reshape(B, R, -1), w2, params["b2"])
    feat = jnp.concatenate([jnp.mean(x2, axis=1), jnp.max(x2, axis=1)], axis=1)
    return feat @ params["wf"] + params["bf"]


def _xavier_uniform(key, shape):
    fan_in, fan_out = shape
    bound = (6.0 / (fan_in + fan_out)) ** 0.5
    return jax.random.uniform(key, shape, jnp.float32, -bound, bound)


if __name__ == "__main__":
    # Small shapes consistent with the module: B graphs of R nodes (ROIs),
    # F input features, HIDDEN hidden units, E hyperedges per graph.
    B, R = 2, 16
    F = 16
    HIDDEN, HIDDEN2 = 32, 16
    E = 8
    N = B * R

    key = jax.random.PRNGKey(0)
    k_x, k_h, k_w, k_w1, k_w2, k_wf = jax.random.split(key, 6)

    x = jax.random.normal(k_x, (N, F), jnp.float32)
    incidence = (jax.random.uniform(k_h, (B, R, E)) < 0.4).astype(jnp.float32)
    edge_weight = jax.random.uniform(k_w, (B, E), jnp.float32, 0.5, 1.5)

    # deterministic parameter init matching _initialize_weights():
    # xavier_uniform for linear weights, zeros for biases, ones/zeros for BN.
    params = {
        "w1": _xavier_uniform(k_w1, (F, HIDDEN)),
        "b1": jnp.zeros((HIDDEN,), jnp.float32),
        "gamma": jnp.ones((HIDDEN,), jnp.float32),
        "beta": jnp.zeros((HIDDEN,), jnp.float32),
        "w2": _xavier_uniform(k_w2, (HIDDEN, HIDDEN2)),
        "b2": jnp.zeros((HIDDEN2,), jnp.float32),
        "wf": _xavier_uniform(k_wf, (2 * HIDDEN2, 1)),
        "bf": jnp.zeros((1,), jnp.float32),
    }

    out = fc_hypergraph_forward(
        x, incidence, edge_weight, params, num_graphs=B, nodes_per_graph=R
    )
    out = jax.block_until_ready(out)
    assert out.shape == (B, 1)

    # Tight check vs a dtype-matched (bf16 matmul) reference; loose check vs the
    # pure-f32 PyTorch-semantics reference (bf16 MXU inputs + approx reciprocal
    # introduce ~1% numerical differences by design).
    ref_bf16 = _reference_bf16(x, incidence, edge_weight, params)
    ref_f32 = _reference_f32(x, incidence, edge_weight, params)
    assert jnp.allclose(out, ref_bf16, rtol=3e-2, atol=3e-2), (out, ref_bf16)
    assert jnp.allclose(out, ref_f32, rtol=1e-1, atol=1e-1), (out, ref_f32)

    # TODO(synk): the `test`/`learn`/`loss`/`finish_training` methods (BCE loss,
    # torchmetrics, matplotlib plotting) are training/eval harness code, not
    # forward compute, and are not kernelized.  nn.Dropout is declared in
    # __init__ but never applied in forward, so it is a no-op here.
    print("KERNEL_OK")
</pallas_src>

<mosaic_0001>
module attributes {stable_mosaic.version = 11 : i64} {
  func.func @_conv1_kernel(%arg0: i32, %arg1: memref<16x16xbf16, #tpu.memory_space<vmem>>, %arg2: memref<1x16x8xbf16, #tpu.memory_space<vmem>>, %arg3: memref<1x1x8xf32, #tpu.memory_space<vmem>>, %arg4: memref<16x32xbf16, #tpu.memory_space<vmem>>, %arg5: memref<1x32xf32, #tpu.memory_space<vmem>>, %arg6: memref<16x32xf32, #tpu.memory_space<vmem>>, %arg7: memref<1x1x32xf32, #tpu.memory_space<vmem>>, %arg8: memref<1x1x32xf32, #tpu.memory_space<vmem>>) attributes {dimension_semantics = [#tpu.dimension_semantics<parallel>], iteration_bounds = array<i64: 2>, scalar_prefetch = 0 : i64, scratch_operands = 0 : i64, tpu.core_type = #tpu.core_type<tc>, window_params = [{transform_indices = @transform_0, window_bounds = array<i64: 16, 16>}, {transform_indices = @transform_1, window_bounds = array<i64: 1, 16, 8>}, {transform_indices = @transform_2, window_bounds = array<i64: 1, 1, 8>}, {pipeline_mode = #tpu.pipeline_mode<synchronous>, transform_indices = @transform_3, window_bounds = array<i64: 16, 32>}, {pipeline_mode = #tpu.pipeline_mode<synchronous>, transform_indices = @transform_4, window_bounds = array<i64: 1, 32>}, {transform_indices = @transform_5, window_bounds = array<i64: 16, 32>}, {transform_indices = @transform_6, window_bounds = array<i64: 1, 1, 32>}, {transform_indices = @transform_7, window_bounds = array<i64: 1, 1, 32>}]} {
    %c0 = arith.constant 0 : index
    %c0_0 = arith.constant 0 : index
    %c0_1 = arith.constant 0 : index
    %0 = vector.load %arg2[%c0, %c0_0, %c0_1] : memref<1x16x8xbf16, #tpu.memory_space<vmem>>, vector<1x16x8xbf16>
    %1 = vector.shape_cast %0 : vector<1x16x8xbf16> to vector<16x8xbf16>
    %c0_2 = arith.constant 0 : index
    %c0_3 = arith.constant 0 : index
    %c0_4 = arith.constant 0 : index
    %2 = vector.load %arg3[%c0_2, %c0_3, %c0_4] : memref<1x1x8xf32, #tpu.memory_space<vmem>>, vector<1x1x8xf32>
    %3 = vector.shape_cast %2 : vector<1x1x8xf32> to vector<1x8xf32>
    %4 = arith.extf %1 : vector<16x8xbf16> to vector<16x8xf32>
    %cst = arith.constant dense<0.000000e+00> : vector<8xf32>
    %5 = vector.multi_reduction <add>, %4, %cst [0] : vector<16x8xf32> to vector<8xf32>
    %6 = vector.shape_cast %5 : vector<8xf32> to vector<1x8xf32>
    %cst_5 = arith.constant 0.000000e+00 : f32
    %7 = vector.broadcast %cst_5 : f32 to vector<1x8xf32>
    %8 = arith.cmpf ogt, %6, %7 : vector<1x8xf32>
    %9 = tpu.reciprocal %6 {approx = true} : vector<1x8xf32> -> vector<1x8xf32>
    %cst_6 = arith.constant 0.000000e+00 : f32
    %10 = vector.broadcast %cst_6 : f32 to vector<1x8xf32>
    %11 = arith.select %8, %9, %10 : vector<1x8xi1>, vector<1x8xf32>
    %12 = vector.broadcast %3 : vector<1x8xf32> to vector<16x8xf32>
    %13 = arith.mulf %4, %12 : vector<16x8xf32>
    %cst_7 = arith.constant dense<0.000000e+00> : vector<16xf32>
    %14 = vector.multi_reduction <add>, %13, %cst_7 [1] : vector<16x8xf32> to vector<16xf32>
    %15 = vector.shape_cast %14 : vector<16xf32> to vector<16x1xf32>
    %cst_8 = arith.constant 0.000000e+00 : f32
    %16 = vector.broadcast %cst_8 : f32 to vector<16x1xf32>
    %17 = arith.cmpf ogt, %15, %16 : vector<16x1xf32>
    %18 = tpu.reciprocal %15 {approx = true} : vector<16x1xf32> -> vector<16x1xf32>
    %cst_9 = arith.constant 0.000000e+00 : f32
    %19 = vector.broadcast %cst_9 : f32 to vector<16x1xf32>
    %20 = arith.select %17, %18, %19 : vector<16x1xi1>, vector<16x1xf32>
    %21 = vector.broadcast %20 : vector<16x1xf32> to vector<16x8xf32>
    %22 = arith.mulf %21, %4 : vector<16x8xf32>
    %23 = arith.mulf %3, %11 : vector<1x8xf32>
    %24 = vector.broadcast %23 : vector<1x8xf32> to vector<16x8xf32>
    %25 = arith.mulf %22, %24 : vector<16x8xf32>
    %26 = arith.truncf %25 : vector<16x8xf32> to vector<16x8xbf16>
    %c0_10 = arith.constant 0 : index
    %c0_11 = arith.constant 0 : index
    %27 = vector.load %arg1[%c0_10, %c0_11] : memref<16x16xbf16, #tpu.memory_space<vmem>>, vector<16x16xbf16>
    %c0_12 = arith.constant 0 : index
    %c0_13 = arith.constant 0 : index
    %28 = vector.load %arg4[%c0_12, %c0_13] : memref<16x32xbf16, #tpu.memory_space<vmem>>, vector<16x32xbf16>
    %c0_14 = arith.constant 0 : index
    %c0_15 = arith.constant 0 : index
    %29 = vector.load %arg5[%c0_14, %c0_15] : memref<1x32xf32, #tpu.memory_space<vmem>>, vector<1x32xf32>
    %cst_16 = arith.constant dense<0.000000e+00> : vector<16x32xf32>
    %30 = tpu.matmul %27, %28, %cst_16 {dimension_numbers = #tpu.dot_dimension_numbers<[1], [0], [0], [1], [0, 0, 1, 1], [], []>} : vector<16x16xbf16>, vector<16x32xbf16>, vector<16x32xf32> -> vector<16x32xf32>
    %31 = vector.broadcast %29 : vector<1x32xf32> to vector<16x32xf32>
    %32 = arith.addf %30, %31 : vector<16x32xf32>
    %33 = arith.truncf %32 : vector<16x32xf32> to vector<16x32xbf16>
    %cst_17 = arith.constant dense<0.000000e+00> : vector<8x32xf32>
    %34 = tpu.matmul %1, %33, %cst_17 {dimension_numbers = #tpu.dot_dimension_numbers<[0], [0], [1], [1], [0, 1, 1, 1], [], []>} : vector<16x8xbf16>, vector<16x32xbf16>, vector<8x32xf32> -> vector<8x32xf32>
    %35 = arith.truncf %34 : vector<8x32xf32> to vector<8x32xbf16>
    %cst_18 = arith.constant dense<0.000000e+00> : vector<16x32xf32>
    %36 = tpu.matmul %26, %35, %cst_18 {dimension_numbers = #tpu.dot_dimension_numbers<[1], [0], [0], [1], [0, 0, 1, 1], [], []>} : vector<16x8xbf16>, vector<8x32xbf16>, vector<16x32xf32> -> vector<16x32xf32>
    %c0_19 = arith.constant 0 : index
    %c0_20 = arith.constant 0 : index
    %37 = vector.load %arg6[%c0_19, %c0_20] : memref<16x32xf32, #tpu.memory_space<vmem>>, vector<16x32xf32>
    tpu.vector_store %arg6[%c0_19, %c0_20], %36 {strides = array<i32>} : memref<16x32xf32, #tpu.memory_space<vmem>>, vector<16x32xf32>,
    %cst_21 = arith.constant dense<0.000000e+00> : vector<32xf32>
    %38 = vector.multi_reduction <add>, %36, %cst_21 [0] : vector<16x32xf32> to vector<32xf32>
    %39 = vector.shape_cast %38 : vector<32xf32> to vector<1x32xf32>
    %c0_22 = arith.constant 0 : index
    %c0_23 = arith.constant 0 : index
    %c0_24 = arith.constant 0 : index
    %40 = vector.load %arg7[%c0_22, %c0_23, %c0_24] : memref<1x1x32xf32, #tpu.memory_space<vmem>>, vector<1x1x32xf32>
    %41 = vector.shape_cast %40 : vector<1x1x32xf32> to vector<1x32xf32>
    %42 = vector.shape_cast %39 : vector<1x32xf32> to vector<1x1x32xf32>
    tpu.vector_store %arg7[%c0_22, %c0_23, %c0_24], %42 {strides = array<i32>} : memref<1x1x32xf32, #tpu.memory_space<vmem>>, vector<1x1x32xf32>,
    %43 = arith.mulf %36, %36 : vector<16x32xf32>
    %cst_25 = arith.constant dense<0.000000e+00> : vector<32xf32>
    %44 = vector.multi_reduction <add>, %43, %cst_25 [0] : vector<16x32xf32> to vector<32xf32>
    %45 = vector.shape_cast %44 : vector<32xf32> to vector<1x32xf32>
    %c0_26 = arith.constant 0 : index
    %c0_27 = arith.constant 0 : index
    %c0_28 = arith.constant 0 : index
    %46 = vector.load %arg8[%c0_26, %c0_27, %c0_28] : memref<1x1x32xf32, #tpu.memory_space<vmem>>, vector<1x1x32xf32>
    %47 = vector.shape_cast %46 : vector<1x1x32xf32> to vector<1x32xf32>
    %48 = vector.shape_cast %45 : vector<1x32xf32> to vector<1x1x32xf32>
    tpu.vector_store %arg8[%c0_26, %c0_27, %c0_28], %48 {strides = array<i32>} : memref<1x1x32xf32, #tpu.memory_space<vmem>>, vector<1x1x32xf32>,
    return
  }
  func.func @transform_0(%arg0: i32) -> (i32, i32) {
    %c0_i32 = arith.constant 0 : i32
    %c0_i32_0 = arith.constant 0 : i32
    return %arg0, %c0_i32 : i32, i32
  }
  func.func @transform_1(%arg0: i32) -> (i32, i32, i32) {
    %c0_i32 = arith.constant 0 : i32
    %c0_i32_0 = arith.constant 0 : i32
    %c0_i32_1 = arith.constant 0 : i32
    return %arg0, %c0_i32, %c0_i32_0 : i32, i32, i32
  }
  func.func @transform_2(%arg0: i32) -> (i32, i32, i32) {
    %c0_i32 = arith.constant 0 : i32
    %c0_i32_0 = arith.constant 0 : i32
    %c0_i32_1 = arith.constant 0 : i32
    return %arg0, %c0_i32, %c0_i32_0 : i32, i32, i32
  }
  func.func @transform_3(%arg0: i32) -> (i32, i32) {
    %c0_i32 = arith.constant 0 : i32
    %c0_i32_0 = arith.constant 0 : i32
    %c0_i32_1 = arith.constant 0 : i32
    return %c0_i32, %c0_i32_0 : i32, i32
  }
  func.func @transform_4(%arg0: i32) -> (i32, i32) {
    %c0_i32 = arith.constant 0 : i32
    %c0_i32_0 = arith.constant 0 : i32
    %c0_i32_1 = arith.constant 0 : i32
    return %c0_i32, %c0_i32_0 : i32, i32
  }
  func.func @transform_5(%arg0: i32) -> (i32, i32) {
    %c0_i32 = arith.constant 0 : i32
    %c0_i32_0 = arith.constant 0 : i32
    return %arg0, %c0_i32 : i32, i32
  }
  func.func @transform_6(%arg0: i32) -> (i32, i32, i32) {
    %c0_i32 = arith.constant 0 : i32
    %c0_i32_0 = arith.constant 0 : i32
    %c0_i32_1 = arith.constant 0 : i32
    return %arg0, %c0_i32, %c0_i32_0 : i32, i32, i32
  }
  func.func @transform_7(%arg0: i32) -> (i32, i32, i32) {
    %c0_i32 = arith.constant 0 : i32
    %c0_i32_0 = arith.constant 0 : i32
    %c0_i32_1 = arith.constant 0 : i32
    return %arg0, %c0_i32, %c0_i32_0 : i32, i32, i32
  }
}

</mosaic_0001>

<llo_original>
// kernel: tpu_custom_call.1
$region0: #{tpu_custom_call.1}
  #allocation0 [shape = 'u32[]', space=smem, size = 0x4, offset = 0x4, fixed_abs, tag = 'smem constant byte address 0x4 - core index']
  #allocation1 [shape = 'u32[144,128]{1,0:T(1,128)}', space=vmem, size = 0x12000, scoped, tag = 'internal scratch']
  %s0 = inlined_call_operand.vmem [shape: bf16[32,16], index: 0, kind: input, shape index: {}]
  %s1 = inlined_call_operand.vmem [shape: bf16[2,16,8], index: 1, kind: input, shape index: {}]
  %s2 = inlined_call_operand.vmem [shape: f32[2,1,8], index: 2, kind: input, shape index: {}]
  %s3 = inlined_call_operand.vmem [shape: bf16[16,32], index: 3, kind: input, shape index: {}]
  %s4 = inlined_call_operand.vmem [shape: f32[1,32], index: 4, kind: input, shape index: {}]
  %s5 = inlined_call_operand.hbm [shape: f32[32,32], index: 5, kind: output, shape index: {0}]
  %s6 = inlined_call_operand.hbm [shape: f32[2,1,32], index: 6, kind: output, shape index: {1}]
  %s7 = inlined_call_operand.hbm [shape: f32[2,1,32], index: 7, kind: output, shape index: {2}]
  %8 = xla_tuple %s5, %s6, %s7
  %s9 = sld [smem:[#allocation0]]
  $region69: #{tpu_custom_call.1} parent=0
    _
  %s11 = ssub.s32 1, %s9
  %s12 = scalar_select 0, %s11, %s9
  $region1: #{tpu_custom_call.1} parent=0
    #allocation2 [shape = 'u8[16384]{0}', space=vmem, size = 0x4000, scoped, tag = 'output window, operand 0']
    #allocation3 [shape = 's32[2]{0}', space=sflag, size = 0x8, scoped, tag = 'scoped memory for tpu_custom_call.1']
    #allocation4 [shape = 'u8[1024]{0}', space=vmem, size = 0x400, scoped, tag = 'output window, operand 1']
    #allocation5 [shape = 's32[2]{0}', space=sflag, size = 0x8, scoped, tag = 'scoped memory for tpu_custom_call.1']
    #allocation6 [shape = 'u8[1024]{0}', space=vmem, size = 0x400, scoped, tag = 'output window, operand 2']
    %13 = vsyncpa [#allocation3], 0
    %s14 = scalar_lea.sflag [#allocation3], 1
    %15 = vsyncpa %s14, 0
    %16 = vsyncpa [#allocation5], 0
    %s17 = scalar_lea.sflag [#allocation5], 1
    %18 = vsyncpa %s17, 0
    loop: start=0, step=1, limit=4
    $region2: #{tpu_custom_call.1} parent=1 // loop_pre_header
      _
    $region3: #{tpu_custom_call.1} parent=1 // loop_header
      %s20 = sphi 0, %s24
      %p21 = scmp.ge.s32.totalorder %s20, 4
      %s30 = sphi 0, %s32
      %s33 = sphi 0, %s30
      %s34 = sphi 0, %s33
      %s50 = sphi 0, %s34
      %s56 = sphi 0, %s58
      %s59 = sphi 0, %s56
      %s60 = sphi 0, %s59
      %s76 = sphi 0, %s60
      %s82 = sphi 0, %s84
      %s85 = sphi 0, %s82
      %s86 = sphi 0, %s85
      %s102 = sphi 0, %s86
      %s106 = sphi 0, %s106
      %s108 = sphi 0, %s106
      %s109 = sphi 0, %s108
      %s123 = sphi 0, %s109
      %s127 = sphi 0, %s127
      %s129 = sphi 0, %s127
      %s130 = sphi 0, %s129
      %s144 = sphi 0, %s130
      %s150 = sphi 0, %s152
      %s153 = sphi 0, %s150
      %s154 = sphi 0, %s153
      %s170 = sphi 0, %s154
      %s176 = sphi 0, %s178
      %s179 = sphi 0, %s176
      %s180 = sphi 0, %s179
      %s196 = sphi 0, %s180
      %s202 = sphi 0, %s204
      %s205 = sphi 0, %s202
      %s206 = sphi 0, %s205
      %s222 = sphi 0, %s206
    $region4: #{tpu_custom_call.1} parent=1 // loop_header_branch
      %23 = sbr.rel (%p21) target = $region8
    $region5: #{tpu_custom_call.1} parent=1 // loop_body
      %s25 = ssub.s32 %s20, 1
      %s26 = ssub.s32 %s20, 2
      %s27 = sadd.s32 %s20, 1
      %s28 = ssub.s32 %s20, %s27
      %p29 = scmp.eq.s32.totalorder %s28, 0
      %s31 = sadd.s32 %s30, 1
      %s32 = scalar_select %p29, %s30, %s31
      %p35 = pneg %p29
      %p36 = scmp.eq.s32.totalorder %s20, 1
      %p37 = por %p35, %p36
      %p38 = scmp.ne.s32.totalorder %s30, %s33
      %p39 = scmp.eq.s32.totalorder %s20, 0
      %p40 = por %p38, %p39
      %p41 = scmp.ne.s32.totalorder %s30, %s33
      %p42 = scmp.eq.s32.totalorder %s25, 1
      %p43 = por %p41, %p42
      %p44 = scmp.ne.s32.totalorder %s33, %s34
      %p45 = scmp.eq.s32.totalorder %s25, 0
      %p46 = por %p44, %p45
      %p47 = scmp.ne.s32.totalorder %s33, %s34
      %p48 = scmp.eq.s32.totalorder %s26, 1
      %p49 = por %p47, %p48
      %p51 = scmp.ne.s32.totalorder %s34, %s50
      %p52 = scmp.eq.s32.totalorder %s26, 0
      %p53 = por %p51, %p52
      %s54 = ssub.s32 %s20, %s27
      %p55 = scmp.eq.s32.totalorder %s54, 0
      %s57 = sadd.s32 %s56, 1
      %s58 = scalar_select %p55, %s56, %s57
      %p61 = pneg %p55
      %p62 = scmp.eq.s32.totalorder %s20, 1
      %p63 = por %p61, %p62
      %p64 = scmp.ne.s32.totalorder %s56, %s59
      %p65 = scmp.eq.s32.totalorder %s20, 0
      %p66 = por %p64, %p65
      %p67 = scmp.ne.s32.totalorder %s56, %s59
      %p68 = scmp.eq.s32.totalorder %s25, 1
      %p69 = por %p67, %p68
      %p70 = scmp.ne.s32.totalorder %s59, %s60
      %p71 = scmp.eq.s32.totalorder %s25, 0
      %p72 = por %p70, %p71
      %p73 = scmp.ne.s32.totalorder %s59, %s60
      %p74 = scmp.eq.s32.totalorder %s26, 1
      %p75 = por %p73, %p74
      %p77 = scmp.ne.s32.totalorder %s60, %s76
      %p78 = scmp.eq.s32.totalorder %s26, 0
      %p79 = por %p77, %p78
      %s80 = ssub.s32 %s20, %s27
      %p81 = scmp.eq.s32.totalorder %s80, 0
      %s83 = sadd.s32 %s82, 1
      %s84 = scalar_select %p81, %s82, %s83
      %p87 = pneg %p81
      %p88 = scmp.eq.s32.totalorder %s20, 1
      %p89 = por %p87, %p88
      %p90 = scmp.ne.s32.totalorder %s82, %s85
      %p91 = scmp.eq.s32.totalorder %s20, 0
      %p92 = por %p90, %p91
      %p93 = scmp.ne.s32.totalorder %s82, %s85
      %p94 = scmp.eq.s32.totalorder %s25, 1
      %p95 = por %p93, %p94
      %p96 = scmp.ne.s32.totalorder %s85, %s86
      %p97 = scmp.eq.s32.totalorder %s25, 0
      %p98 = por %p96, %p97
      %p99 = scmp.ne.s32.totalorder %s85, %s86
      %p100 = scmp.eq.s32.totalorder %s26, 1
      %p101 = por %p99, %p100
      %p103 = scmp.ne.s32.totalorder %s86, %s102
      %p104 = scmp.eq.s32.totalorder %s26, 0
      %p105 = por %p103, %p104
      %s107 = sadd.s32 %s106, 1
      %p110 = scmp.eq.s32.totalorder %s20, 1
      %p111 = scmp.ne.s32.totalorder %s106, %s108
      %p112 = scmp.eq.s32.totalorder %s20, 0
      %p113 = por %p111, %p112
      %p114 = scmp.ne.s32.totalorder %s106, %s108
      %p115 = scmp.eq.s32.totalorder %s25, 1
      %p116 = por %p114, %p115
      %p117 = scmp.ne.s32.totalorder %s108, %s109
      %p118 = scmp.eq.s32.totalorder %s25, 0
      %p119 = por %p117, %p118
      %p120 = scmp.ne.s32.totalorder %s108, %s109
      %p121 = scmp.eq.s32.totalorder %s26, 1
      %p122 = por %p120, %p121
      %p124 = scmp.ne.s32.totalorder %s109, %s123
      %p125 = scmp.eq.s32.totalorder %s26, 0
      %p126 = por %p124, %p125
      %s128 = sadd.s32 %s127, 1
      %p131 = scmp.eq.s32.totalorder %s20, 1
      %p132 = scmp.ne.s32.totalorder %s127, %s129
      %p133 = scmp.eq.s32.totalorder %s20, 0
      %p134 = por %p132, %p133
      %p135 = scmp.ne.s32.totalorder %s127, %s129
      %p136 = scmp.eq.s32.totalorder %s25, 1
      %p137 = por %p135, %p136
      %p138 = scmp.ne.s32.totalorder %s129, %s130
      %p139 = scmp.eq.s32.totalorder %s25, 0
      %p140 = por %p138, %p139
      %p141 = scmp.ne.s32.totalorder %s129, %s130
      %p142 = scmp.eq.s32.totalorder %s26, 1
      %p143 = por %p141, %p142
      %p145 = scmp.ne.s32.totalorder %s130, %s144
      %p146 = scmp.eq.s32.totalorder %s26, 0
      %p147 = por %p145, %p146
      %s148 = ssub.s32 %s20, %s27
      %p149 = scmp.eq.s32.totalorder %s148, 0
      %s151 = sadd.s32 %s150, 1
      %s152 = scalar_select %p149, %s150, %s151
      %p155 = pneg %p149
      %p156 = scmp.eq.s32.totalorder %s20, 1
      %p157 = por %p155, %p156
      %p158 = scmp.ne.s32.totalorder %s150, %s153
      %p159 = scmp.eq.s32.totalorder %s20, 0
      %p160 = por %p158, %p159
      %p161 = scmp.ne.s32.totalorder %s150, %s153
      %p162 = scmp.eq.s32.totalorder %s25, 1
      %p163 = por %p161, %p162
      %p164 = scmp.ne.s32.totalorder %s153, %s154
      %p165 = scmp.eq.s32.totalorder %s25, 0
      %p166 = por %p164, %p165
      %p167 = scmp.ne.s32.totalorder %s153, %s154
      %p168 = scmp.eq.s32.totalorder %s26, 1
      %p169 = por %p167, %p168
      %p171 = scmp.ne.s32.totalorder %s154, %s170
      %p172 = scmp.eq.s32.totalorder %s26, 0
      %p173 = por %p171, %p172
      %s174 = ssub.s32 %s20, %s27
      %p175 = scmp.eq.s32.totalorder %s174, 0
      %s177 = sadd.s32 %s176, 1
      %s178 = scalar_select %p175, %s176, %s177
      %p181 = pneg %p175
      %p182 = scmp.eq.s32.totalorder %s20, 1
      %p183 = por %p181, %p182
      %p184 = scmp.ne.s32.totalorder %s176, %s179
      %p185 = scmp.eq.s32.totalorder %s20, 0
      %p186 = por %p184, %p185
      %p187 = scmp.ne.s32.totalorder %s176, %s179
      %p188 = scmp.eq.s32.totalorder %s25, 1
      %p189 = por %p187, %p188
      %p190 = scmp.ne.s32.totalorder %s179, %s180
      %p191 = scmp.eq.s32.totalorder %s25, 0
      %p192 = por %p190, %p191
      %p193 = scmp.ne.s32.totalorder %s179, %s180
      %p194 = scmp.eq.s32.totalorder %s26, 1
      %p195 = por %p193, %p194
      %p197 = scmp.ne.s32.totalorder %s180, %s196
      %p198 = scmp.eq.s32.totalorder %s26, 0
      %p199 = por %p197, %p198
      %s200 = ssub.s32 %s20, %s27
      %p201 = scmp.eq.s32.totalorder %s200, 0
      %s203 = sadd.s32 %s202, 1
      %s204 = scalar_select %p201, %s202, %s203
      %p207 = pneg %p201
      %p208 = scmp.eq.s32.totalorder %s20, 1
      %p209 = por %p207, %p208
      %p210 = scmp.ne.s32.totalorder %s202, %s205
      %p211 = scmp.eq.s32.totalorder %s20, 0
      %p212 = por %p210, %p211
      %p213 = scmp.ne.s32.totalorder %s202, %s205
      %p214 = scmp.eq.s32.totalorder %s25, 1
      %p215 = por %p213, %p214
      %p216 = scmp.ne.s32.totalorder %s205, %s206
      %p217 = scmp.eq.s32.totalorder %s25, 0
      %p218 = por %p216, %p217
      %p219 = scmp.ne.s32.totalorder %s205, %s206
      %p220 = scmp.eq.s32.totalorder %s26, 1
      %p221 = por %p219, %p220
      %p223 = scmp.ne.s32.totalorder %s206, %s222
      %p224 = scmp.eq.s32.totalorder %s26, 0
      %p225 = por %p223, %p224
      %p226 = scmp.le.s32.totalorder 1, %s20
      %p227 = scmp.lt.s32.totalorder %s20, 3
      %p228 = pnand %p226, %p227
      %p229 = pneg %p228
      // Predicated region
      $region9: #{tpu_custom_call.1} parent=5 // pred_check
        _
      $region10: #{tpu_custom_call.1} parent=5 // pred_check_branch
        %231 = sbr.rel (%p228) target = $region12
      $region11: #{tpu_custom_call.1} parent=5 // pred_region
        %s232 = ssub.s32 %s20, 1
        // Predicated region
        $region13: #{tpu_custom_call.1} parent=11 // pred_check
          %p233 = pneg %p119
        $region14: #{tpu_custom_call.1} parent=11 // pred_check_branch
          %235 = sbr.rel (%p233) target = $region16
        $region15: #{tpu_custom_call.1} parent=11 // pred_region
          _
        $region16: #{tpu_custom_call.1} parent=11 // pred_fallthru
          _
        // Predicated region
        $region17: #{tpu_custom_call.1} parent=11 // pred_check
          %p236 = pneg %p140
        $region18: #{tpu_custom_call.1} parent=11 // pred_check_branch
          %238 = sbr.rel (%p236) target = $region20
        $region19: #{tpu_custom_call.1} parent=11 // pred_region
          _
        $region20: #{tpu_custom_call.1} parent=11 // pred_fallthru
          _
      $region12: #{tpu_custom_call.1} parent=5 // pred_fallthru
        _
      %p239 = scmp.lt.s32.totalorder %s20, 2
      // Predicated region
      $region21: #{tpu_custom_call.1} parent=5 // pred_check
        %p240 = pneg %p239
      $region22: #{tpu_custom_call.1} parent=5 // pred_check_branch
        %242 = sbr.rel (%p240) target = $region24
      $region23: #{tpu_custom_call.1} parent=5 // pred_region
        // Predicated region
        $region25: #{tpu_custom_call.1} parent=23 // pred_check
          %p243 = pneg %p40
        $region26: #{tpu_custom_call.1} parent=23 // pred_check_branch
          %245 = sbr.rel (%p243) target = $region28
        $region27: #{tpu_custom_call.1} parent=23 // pred_region
          %s246 = smul.u32 2, %s20
          %p247 = scmp.lt.s32.totalorder %s246, 3
          %s248 = scalar_select %p247, %s246, 3
          %s249 = smul.addr %s248, 4
          %s250 = scalar_lea.vmem %s0, %s249
          %s251 = smul.u32 2, %s20
        $region28: #{tpu_custom_call.1} parent=23 // pred_fallthru
          _
        // Predicated region
        $region29: #{tpu_custom_call.1} parent=23 // pred_check
          %p252 = pneg %p66
        $region30: #{tpu_custom_call.1} parent=23 // pred_check_branch
          %254 = sbr.rel (%p252) target = $region32
        $region31: #{tpu_custom_call.1} parent=23 // pred_region
          %p255 = scmp.lt.s32.totalorder %s20, 1
          %s256 = scalar_select %p255, %s20, 1
          %s257 = smul.addr %s256, 2
          %s258 = smul.addr %s257, 4
          %s259 = scalar_lea.vmem %s1, %s258
        $region32: #{tpu_custom_call.1} parent=23 // pred_fallthru
          _
        // Predicated region
        $region33: #{tpu_custom_call.1} parent=23 // pred_check
          %p260 = pneg %p92
        $region34: #{tpu_custom_call.1} parent=23 // pred_check_branch
          %262 = sbr.rel (%p260) target = $region36
        $region35: #{tpu_custom_call.1} parent=23 // pred_region
          %p263 = scmp.lt.s32.totalorder %s20, 1
          %s264 = scalar_select %p263, %s20, 1
          %s265 = scalar_lea.vmem %s2, %s264
        $region36: #{tpu_custom_call.1} parent=23 // pred_fallthru
          _
      $region24: #{tpu_custom_call.1} parent=5 // pred_fallthru
        _
      %p266 = scmp.le.s32.totalorder 1, %s20
      %p267 = scmp.lt.s32.totalorder %s20, 3
      %p268 = pnand %p266, %p267
      %p269 = pneg %p268
      // Predicated region
      $region37: #{tpu_custom_call.1} parent=5 // pred_check
        _
      $region38: #{tpu_custom_call.1} parent=5 // pred_check_branch
        %271 = sbr.rel (%p268) target = $region40
      $region39: #{tpu_custom_call.1} parent=5 // pred_region
        %s272 = ssub.s32 %s20, 1
        %s273 = smul.u32 2, %s25
        %p274 = scmp.lt.s32.totalorder %s273, 3
        %s275 = scalar_select %p274, %s273, 3
        %s276 = smul.addr %s275, 4
        %s277 = scalar_lea.vmem %s0, %s276
        %p278 = pneg %p46
        %p279 = pneg %p43
        %p280 = scmp.lt.s32.totalorder %s25, 1
        %s281 = scalar_select %p280, %s25, 1
        %s282 = smul.addr %s281, 2
        %s283 = smul.addr %s282, 4
        %s284 = scalar_lea.vmem %s1, %s283
        %p285 = pneg %p72
        %p286 = pneg %p69
        %p287 = scmp.lt.s32.totalorder %s25, 1
        %s288 = scalar_select %p287, %s25, 1
        %s289 = scalar_lea.vmem %s2, %s288
        %p290 = pneg %p98
        %p291 = pneg %p95
        %p292 = pneg %p119
        %p293 = pneg %p116
        %p294 = pneg %p140
        %p295 = pneg %p137
        %p296 = pneg %p166
        %p297 = pneg %p163
        %s298 = sand.u32 %s153, 1
        %s299 = scalar_lea.sflag [#allocation3], %s298
        %s300 = sand.u32 %s153, 1
        %s301 = smul.addr %s300, 16
        %s302 = scalar_lea.vmem [#allocation2], %s301
        %p303 = pneg %p192
        %p304 = pneg %p189
        %s305 = sand.u32 %s25, 1
        %s306 = scalar_lea.sflag [#allocation5], %s305
        %s307 = sand.u32 %s179, 1
        %s308 = scalar_lea.vmem [#allocation4], %s307
        %p309 = pneg %p218
        %p310 = pneg %p215
        %s311 = sand.u32 %s25, 1
        %s312 = scalar_lea.sflag [#allocation5], %s311
        %s313 = sand.u32 %s205, 1
        %s314 = scalar_lea.vmem [#allocation6], %s313
        %s315 = smul.u32 2, %s25
        %p316 = scmp.lt.s32.totalorder %s315, 3
        %s317 = scalar_select %p316, %s315, 3
        %s318 = smul.addr %s317, 4
        %s319 = scalar_lea.vmem %s0, %s318
        %s320 = smul.u32 2, %s25
        %p321 = scmp.lt.s32.totalorder %s25, 1
        %s322 = scalar_select %p321, %s25, 1
        %s323 = smul.addr %s322, 2
        %s324 = smul.addr %s323, 4
        %s325 = scalar_lea.vmem %s1, %s324
        %p326 = scmp.lt.s32.totalorder %s25, 1
        %s327 = scalar_select %p326, %s25, 1
        %s328 = scalar_lea.vmem %s2, %s327
        %s329 = smul.u32 2, %s25
        %v331 = vld [vmem:[%s325] sm:$0xf]
        %v332 = vld [vmem:[%s325 + $0x4] sm:$0xf]
        %v333 = vld [vmem:[%s328] sm:$0x1]
        %v334 = vunpack.c.l.bf16 %v331
        %v335 = vunpack.c.l.bf16 %v332
        %vm336 = vcmask 64512
        %v337 = vsel %vm336, %v334, 0.0
        %v338 = vsel %vm336, %v335, 0.0
        %v339 = vadd.f32 %v337, %v338
        %v340 = vrot.slane %v339, 4
        %v341 = vadd.f32 %v339, %v340
        %v342 = vrot.slane %v341, 2
        %v343 = vadd.f32 %v341, %v342
        %v344 = vrot.slane %v343, 1
        %v345 = vadd.f32 %v343, %v344
        %vm346 = vcmp.gt.f32.partialorder %v345, 0.0
        %v347 = vrcp.pop %v345
        %v348 = vsel %vm346, %v347, 0.0
        %v350 = vlaneseq
        %v351 = vshrl.u32 %v350, 7
        %v352 = vsub.s32 0, %v351
        %v353 = vrot.slane %v333, %v352
        %v355 = vmul.f32 %v334, %v353
        %v356 = vmul.f32 %v335, %v353
        %v357 = vsel %vm336, %v355, 0.0
        %358 = vadd.xlane.f32.xlu0 %v357
        %v359 = vpop.xlane.xlu0 %358
        %v360 = vsel %vm336, %v356, 0.0
        %361 = vadd.xlane.f32.xlu0 %v360
        %v362 = vpop.xlane.xlu0 %361
        %vm363 = vcmp.gt.f32.partialorder %v359, 0.0
        %vm364 = vcmp.gt.f32.partialorder %v362, 0.0
        %v365 = vrcp.pop %v359
        %v366 = vrcp.pop %v362
        %v367 = vsel %vm363, %v365, 0.0
        %v368 = vsel %vm364, %v366, 0.0
        %v369 = vmul.f32 %v367, %v334
        %v370 = vmul.f32 %v368, %v335
        %v371 = vmul.f32 %v333, %v348
        %v373 = vlaneseq
        %v374 = vshrl.u32 %v373, 7
        %v375 = vsub.s32 0, %v374
        %v376 = vrot.slane %v371, %v375
        %v378 = vmul.f32 %v369, %v376
        %v379 = vmul.f32 %v370, %v376
        %v380 = vpack.c.bf16 %v379, %v378
        %v381 = vld [vmem:[%s319] sm:$0xf]
        %v382 = vld [vmem:[%s319 + $0x4] sm:$0xf]
        %v383 = vld [vmem:[%s3] sm:$0xf]
        %v384 = vld [vmem:[%s3 + $0x4] sm:$0xf]
        %v385 = vld [vmem:[%s4] sm:$0x1]
        %v387 = vlaneseq
        %v388 = vshrl.u32 %v387, 7
        %v389 = vsub.s32 0, %v388
        %v390 = vrot.slane %v385, %v389
        %v394 = vunpack.c.l.b16 %v381
        %v395 = vunpack.c.l.b16 %v382
        %v396 = vpack.c.b16 %v395, %v394
        %v399 = vunpack.c.l.b16 %v383
        %v400 = vunpack.c.l.b16 %v384
        %v401 = vpack.c.b16 %v400, %v399
        %vm403 = vcmask 130048
        %v405 = vsel %vm403, %v396, 0
        %407 = vmatprep.subr.bf16.mxu0 0
        %408 = vmatpush1.bf16.msra.mxu0 %v401
        %409 = vmatprep.subr.bf16.mxu0 0
        %410 = vmatpush1.bf16.msra.mxu0 0
        %411 = vmatprep.subr.bf16.mxu0 0
        %412 = vmatpush1.bf16.msra.mxu0 0
        %413 = vmatprep.subr.bf16.mxu0 0
        %414 = vmatpush1.bf16.msra.mxu0 0
        %415 = vmatprep.subr.bf16.mxu0 0
        %416 = vmatpush1.bf16.msra.mxu0 0
        %417 = vmatprep.subr.bf16.mxu0 0
        %418 = vmatpush1.bf16.msra.mxu0 0
        %419 = vmatprep.subr.bf16.mxu0 0
        %420 = vmatpush1.bf16.msra.mxu0 0
        %421 = vmatprep.subr.bf16.mxu0 0
        %422 = vmatpush1.bf16.msra.mxu0 0
        %423 = vmatprep.subr.bf16.mxu0 0
        %424 = vmatpush1.bf16.msra.mxu0 0
        %425 = vmatprep.subr.bf16.mxu0 0
        %426 = vmatpush1.bf16.msra.mxu0 0
        %427 = vmatprep.subr.bf16.mxu0 0
        %428 = vmatpush1.bf16.msra.mxu0 0
        %429 = vmatprep.subr.bf16.mxu0 0
        %430 = vmatpush1.bf16.msra.mxu0 0
        %431 = vmatprep.subr.bf16.mxu0 0
        %432 = vmatpush1.bf16.msra.mxu0 0
        %433 = vmatprep.subr.bf16.mxu0 0
        %434 = vmatpush1.bf16.msra.mxu0 0
        %435 = vmatprep.subr.bf16.mxu0 0
        %436 = vmatpush1.bf16.msra.mxu0 0
        %437 = vmatprep.subr.bf16.mxu0 0
        %438 = vmatpush1.bf16.msra.mxu0 0
        %439 = vmatprep.mubr.bf16.mxu0 0
        %440 = vmatmul.mubr.bf16.gmra.mrb[0].mxu0 %v405
        %v441 = vpop.f32.mrb[0].mxu0
        %v442 = vadd.f32 %v390, %v441
        %v443 = vpop.f32.mrb[0].mxu0
        %v444 = vpop.f32.mrb[0].mxu0
        %v445 = vadd.f32 %v390, %v444
        %v446 = vpop.f32.mrb[0].mxu0
        %447 = vdwg.mxu0
        %v448 = vpack.c.bf16 %v445, %v442
        %v451 = vunpack.c.l.b16 %v331
        %v452 = vunpack.c.l.b16 %v332
        %v453 = vpack.c.b16 %v452, %v451
        %455 = vxpose.xlu0.c.b16.start [1/8] %v453, 128
        %456 = vxpose.xlu0.c.b16.cont [2/8] 0, 128
        %457 = vxpose.xlu0.c.b16.cont [3/8] 0, 128
        %458 = vxpose.xlu0.c.b16.cont [4/8] 0, 128
        %459 = vxpose.xlu0.c.b16.cont [5/8] 0, 128
        %460 = vxpose.xlu0.c.b16.cont [6/8] 0, 128
        %461 = vxpose.xlu0.c.b16.cont [7/8] 0, 128
        %462 = vxpose.xlu0.c.b16.end [8/8] 0, 128
        %v463 = vpop.trf.xlu0
        %v464 = vpop.trf.xlu0
        %v465 = vpop.trf.xlu0
        %v466 = vpop.trf.xlu0
        %v467 = vpop.trf.xlu0
        %v468 = vpop.trf.xlu0
        %v469 = vpop.trf.xlu0
        %v470 = vpop.trf.xlu0
        %v472 = vsel %vm403, %v463, 0
        %474 = vmatprep.subr.bf16.mxu0 0
        %475 = vmatpush1.bf16.msra.mxu0 %v448
        %476 = vmatprep.subr.bf16.mxu0 0
        %477 = vmatpush1.bf16.msra.mxu0 0
        %478 = vmatprep.subr.bf16.mxu0 0
        %479 = vmatpush1.bf16.msra.mxu0 0
        %480 = vmatprep.subr.bf16.mxu0 0
        %481 = vmatpush1.bf16.msra.mxu0 0
        %482 = vmatprep.subr.bf16.mxu0 0
        %483 = vmatpush1.bf16.msra.mxu0 0
        %484 = vmatprep.subr.bf16.mxu0 0
        %485 = vmatpush1.bf16.msra.mxu0 0
        %486 = vmatprep.subr.bf16.mxu0 0
        %487 = vmatpush1.bf16.msra.mxu0 0
        %488 = vmatprep.subr.bf16.mxu0 0
        %489 = vmatpush1.bf16.msra.mxu0 0
        %490 = vmatprep.subr.bf16.mxu0 0
        %491 = vmatpush1.bf16.msra.mxu0 0
        %492 = vmatprep.subr.bf16.mxu0 0
        %493 = vmatpush1.bf16.msra.mxu0 0
        %494 = vmatprep.subr.bf16.mxu0 0
        %495 = vmatpush1.bf16.msra.mxu0 0
        %496 = vmatprep.subr.bf16.mxu0 0
        %497 = vmatpush1.bf16.msra.mxu0 0
        %498 = vmatprep.subr.bf16.mxu0 0
        %499 = vmatpush1.bf16.msra.mxu0 0
        %500 = vmatprep.subr.bf16.mxu0 0
        %501 = vmatpush1.bf16.msra.mxu0 0
        %502 = vmatprep.subr.bf16.mxu0 0
        %503 = vmatpush1.bf16.msra.mxu0 0
        %504 = vmatprep.subr.bf16.mxu0 0
        %505 = vmatpush1.bf16.msra.mxu0 0
        %506 = vmatprep.mubr.bf16.mxu0 0
        %507 = vmatmul.mubr.bf16.gmra.mrb[0].mxu0 %v472
        %v508 = vpop.f32.mrb[0].mxu0
        %v509 = vadd.f32 0.0, %v508
        %v510 = vpop.f32.mrb[0].mxu0
        %v511 = vpop.f32.mrb[0].mxu0
        %v512 = vpop.f32.mrb[0].mxu0
        %513 = vdwg.mxu0
        %v514 = vpack.c.bf16 %v509, %v509
        %v516 = vsel %vm336, %v380, 0
        %vm518 = vcmask 1043456
        %v520 = vsel %vm518, %v514, 0
        %522 = vmatprep.subr.bf16.mxu0 0
        %523 = vmatpush1.bf16.msra.mxu0 %v520
        %524 = vmatprep.subr.bf16.mxu0 0
        %525 = vmatpush1.bf16.msra.mxu0 0
        %526 = vmatprep.subr.bf16.mxu0 0
        %527 = vmatpush1.bf16.msra.mxu0 0
        %528 = vmatprep.subr.bf16.mxu0 0
        %529 = vmatpush1.bf16.msra.mxu0 0
        %530 = vmatprep.subr.bf16.mxu0 0
        %531 = vmatpush1.bf16.msra.mxu0 0
        %532 = vmatprep.subr.bf16.mxu0 0
        %533 = vmatpush1.bf16.msra.mxu0 0
        %534 = vmatprep.subr.bf16.mxu0 0
        %535 = vmatpush1.bf16.msra.mxu0 0
        %536 = vmatprep.subr.bf16.mxu0 0
        %537 = vmatpush1.bf16.msra.mxu0 0
        %538 = vmatprep.subr.bf16.mxu0 0
        %539 = vmatpush1.bf16.msra.mxu0 0
        %540 = vmatprep.subr.bf16.mxu0 0
        %541 = vmatpush1.bf16.msra.mxu0 0
        %542 = vmatprep.subr.bf16.mxu0 0
        %543 = vmatpush1.bf16.msra.mxu0 0
        %544 = vmatprep.subr.bf16.mxu0 0
        %545 = vmatpush1.bf16.msra.mxu0 0
        %546 = vmatprep.subr.bf16.mxu0 0
        %547 = vmatpush1.bf16.msra.mxu0 0
        %548 = vmatprep.subr.bf16.mxu0 0
        %549 = vmatpush1.bf16.msra.mxu0 0
        %550 = vmatprep.subr.bf16.mxu0 0
        %551 = vmatpush1.bf16.msra.mxu0 0
        %552 = vmatprep.subr.bf16.mxu0 0
        %553 = vmatpush1.bf16.msra.mxu0 0
        %554 = vmatprep.mubr.bf16.mxu0 0
        %555 = vmatmul.mubr.bf16.gmra.mrb[0].mxu0 %v516
        %v556 = vpop.f32.mrb[0].mxu0
        %v557 = vadd.f32 0.0, %v556
        %v558 = vpop.f32.mrb[0].mxu0
        %v559 = vpop.f32.mrb[0].mxu0
        %v560 = vadd.f32 0.0, %v559
        %v561 = vpop.f32.mrb[0].mxu0
        %562 = vdwg.mxu0
        %vm563 = vcmask 261120
        %564 = vst.msk [vmem:[%s302] sm:$0xff] %vm563, %v557
        %565 = vst.msk [vmem:[%s302 + $0x8] sm:$0xff] %vm563, %v560
        %v566 = vsel %vm563, %v557, 0.0
        %v567 = vsel %vm563, %v560, 0.0
        %v568 = vadd.f32 %v566, %v567
        %v569 = vrot.slane %v568, 4
        %v570 = vadd.f32 %v568, %v569
        %v571 = vrot.slane %v570, 2
        %v572 = vadd.f32 %v570, %v571
        %v573 = vrot.slane %v572, 1
        %v574 = vadd.f32 %v572, %v573
        %vm575 = vcmask 253952
        %576 = vst.msk [vmem:[%s308] sm:$0x1] %vm575, %v574
        %v577 = vmul.f32 %v557, %v557
        %v578 = vmul.f32 %v560, %v560
        %v579 = vsel %vm563, %v577, 0.0
        %v580 = vsel %vm563, %v578, 0.0
        %v581 = vadd.f32 %v579, %v580
        %v582 = vrot.slane %v581, 4
        %v583 = vadd.f32 %v581, %v582
        %v584 = vrot.slane %v583, 2
        %v585 = vadd.f32 %v583, %v584
        %v586 = vrot.slane %v585, 1
        %v587 = vadd.f32 %v585, %v586
        %588 = vst.msk [vmem:[%s314] sm:$0x1] %vm575, %v587
        %s589 = sand.u32 %s153, 1
        %s590 = scalar_lea.sflag [#allocation3], %s589
        %s591 = sand.u32 %s153, 1
        %s592 = smul.addr %s591, 16
        %s593 = scalar_lea.vmem [#allocation2], %s592
        %s594 = sand.u32 %s25, 1
        %s595 = scalar_lea.sflag [#allocation5], %s594
        %s596 = sand.u32 %s179, 1
        %s597 = scalar_lea.vmem [#allocation4], %s596
        %s598 = sand.u32 %s25, 1
        %s599 = scalar_lea.sflag [#allocation5], %s598
        %s600 = sand.u32 %s205, 1
        %s601 = scalar_lea.vmem [#allocation6], %s600
        // Predicated region
        $region41: #{tpu_custom_call.1} parent=39 // pred_check
          %p602 = pneg %p163
        $region42: #{tpu_custom_call.1} parent=39 // pred_check_branch
          %604 = sbr.rel (%p602) target = $region44
        $region43: #{tpu_custom_call.1} parent=39 // pred_region
          %s605 = smul.u32 2, %s25
          %s607 = ssub.s32 256, 256
          %608 = vsyncadd %s590, %s607
          %s609 = smul.addr %s605, 128
          %s610 = scalar_lea.hbm %s5, %s609
          %s611 = sshll.u32 %s593, 4
          %s612 = int_to_ptr.vmem [resolvable:$true] %s611
          %617 = dma.vmem_to_hbm [thread:$0]  %s612, 256, %s610, %s590, 128, 128, 8
        $region44: #{tpu_custom_call.1} parent=39 // pred_fallthru
          _
        // Predicated region
        $region45: #{tpu_custom_call.1} parent=39 // pred_check
          %p618 = pneg %p189
        $region46: #{tpu_custom_call.1} parent=39 // pred_check_branch
          %620 = sbr.rel (%p618) target = $region48
        $region47: #{tpu_custom_call.1} parent=39 // pred_region
          %s622 = ssub.s32 16, 16
          %623 = vsyncadd %s595, %s622
          %s624 = smul.addr %s25, 16
          %s625 = scalar_lea.hbm %s6, %s624
          %s627 = sshll.u32 %s597, 4
          %s628 = int_to_ptr.vmem [resolvable:$true] %s627
          %630 = dma.vmem_to_hbm [thread:$0]  %s628, 16, %s625, %s595
        $region48: #{tpu_custom_call.1} parent=39 // pred_fallthru
          _
        // Predicated region
        $region49: #{tpu_custom_call.1} parent=39 // pred_check
          %p631 = pneg %p215
        $region50: #{tpu_custom_call.1} parent=39 // pred_check_branch
          %633 = sbr.rel (%p631) target = $region52
        $region51: #{tpu_custom_call.1} parent=39 // pred_region
          %s635 = ssub.s32 16, 16
          %636 = vsyncadd %s599, %s635
          %s637 = smul.addr %s25, 16
          %s638 = scalar_lea.hbm %s7, %s637
          %s640 = sshll.u32 %s601, 4
          %s641 = int_to_ptr.vmem [resolvable:$true] %s640
          %643 = dma.vmem_to_hbm [thread:$0]  %s641, 16, %s638, %s599
        $region52: #{tpu_custom_call.1} parent=39 // pred_fallthru
          _
      $region40: #{tpu_custom_call.1} parent=5 // pred_fallthru
        _
      %p644 = scmp.le.s32.totalorder 2, %s20
      // Predicated region
      $region53: #{tpu_custom_call.1} parent=5 // pred_check
        %p645 = pneg %p644
      $region54: #{tpu_custom_call.1} parent=5 // pred_check_branch
        %647 = sbr.rel (%p645) target = $region56
      $region55: #{tpu_custom_call.1} parent=5 // pred_region
        %s648 = ssub.s32 %s20, 2
        // Predicated region
        $region57: #{tpu_custom_call.1} parent=55 // pred_check
          %p649 = pneg %p169
        $region58: #{tpu_custom_call.1} parent=55 // pred_check_branch
          %651 = sbr.rel (%p649) target = $region60
        $region59: #{tpu_custom_call.1} parent=55 // pred_region
          %s652 = sand.u32 %s154, 1
          %s653 = scalar_lea.sflag [#allocation3], %s652
          %s654 = sand.u32 %s154, 1
          %s655 = smul.addr %s654, 16
          %s656 = scalar_lea.vmem [#allocation2], %s655
          %657 = dma.done %s653, 256
        $region60: #{tpu_custom_call.1} parent=55 // pred_fallthru
          _
        // Predicated region
        $region61: #{tpu_custom_call.1} parent=55 // pred_check
          %p658 = pneg %p195
        $region62: #{tpu_custom_call.1} parent=55 // pred_check_branch
          %660 = sbr.rel (%p658) target = $region64
        $region63: #{tpu_custom_call.1} parent=55 // pred_region
          %s661 = sand.u32 %s26, 1
          %s662 = scalar_lea.sflag [#allocation5], %s661
          %s663 = sand.u32 %s180, 1
          %s664 = scalar_lea.vmem [#allocation4], %s663
          %665 = dma.done %s662, 16
        $region64: #{tpu_custom_call.1} parent=55 // pred_fallthru
          _
        // Predicated region
        $region65: #{tpu_custom_call.1} parent=55 // pred_check
          %p666 = pneg %p221
        $region66: #{tpu_custom_call.1} parent=55 // pred_check_branch
          %668 = sbr.rel (%p666) target = $region68
        $region67: #{tpu_custom_call.1} parent=55 // pred_region
          %s669 = sand.u32 %s26, 1
          %s670 = scalar_lea.sflag [#allocation5], %s669
          %s671 = sand.u32 %s206, 1
          %s672 = scalar_lea.vmem [#allocation6], %s671
          %673 = dma.done %s670, 16
        $region68: #{tpu_custom_call.1} parent=55 // pred_fallthru
          _
      $region56: #{tpu_custom_call.1} parent=5 // pred_fallthru
        _
    $region6: #{tpu_custom_call.1} parent=1 // loop_footer
      %s24 = sadd.s32 1, %s20
    $region7: #{tpu_custom_call.1} parent=1 // loop_footer_branch
      %19 = sbr.rel target = $region3
    $region8: #{tpu_custom_call.1} parent=1 // loop_exit
      _
    %674 = vsyncpa [#allocation3], 1
    %s675 = scalar_lea.sflag [#allocation3], 1
    %676 = vsyncpa %s675, 1
    %677 = vsyncpa [#allocation5], 1
    %s678 = scalar_lea.sflag [#allocation5], 1
    %679 = vsyncpa %s678, 1

</llo_original>
